<compile_context>
chip_gen: v6e
topology: v6e:2x2x1
jax: 0.10.0
libtpu: 0.0.40
codegen_flags: <defaults>
</compile_context>

<pallas_src>
import functools

import jax
import jax.numpy as jnp
from jax.experimental import pallas as pl
from jax.experimental.pallas import tpu as pltpu

LN_EPS = 1e-5
_BATCH_BLOCK = 256  # batch tile used once B is large enough to grid over


def _critic_kernel(E, h0, h1, has_ac, *refs):
    """Fused ensemble-critic forward on one (B or Bt)-row tile."""
    if has_ac:
        (s_ref, a_ref, w0s_ref, w0a_ref, w1_ref, vec_ref, b2_ref, out_ref) = refs
    else:
        (s_ref, w0s_ref, w1_ref, vec_ref, b2_ref, out_ref) = refs

    EH0 = E * h0
    EH1 = E * h1

    # Unpack the packed row-vector params (single VMEM operand, static slices).
    b0 = vec_ref[0:1, :EH0]
    gam = vec_ref[1:2, :EH0]
    beta = vec_ref[2:3, :EH0]
    b1 = vec_ref[3:4, :EH1]
    w2 = vec_ref[4:5, :EH1]

    # --- Linear(input_dim, h0), fused over heads; split-K over (state, ac) ---
    h = jnp.dot(s_ref[...], w0s_ref[...], preferred_element_type=jnp.float32)
    if has_ac:
        h = h + jnp.dot(a_ref[...], w0a_ref[...],
                        preferred_element_type=jnp.float32)
    h = h + b0                                                   # (Bt, E*h0)

    # --- Per-head LayerNorm (two-pass variance, exact f32 on the VPU) ---
    parts = []
    for e in range(E):                                           # E is tiny, static
        he = h[:, e * h0:(e + 1) * h0]
        mu = jnp.mean(he, axis=-1, keepdims=True)
        d = he - mu
        var = jnp.mean(d * d, axis=-1, keepdims=True)
        parts.append(d * jax.lax.rsqrt(var + LN_EPS))
    hn = parts[0] if E == 1 else jnp.concatenate(parts, axis=-1)  # (Bt, E*h0)

    # --- affine + Tanh (full width) ---
    h = jnp.tanh(hn * gam + beta)

    # --- MLP hidden: block-diagonal Linear(h0, h1) over all heads + ReLU ---
    # TODO(synk): MLP activation assumed ReLU (module's `activation` arg is config-driven).
    h = jnp.dot(h, w1_ref[...], preferred_element_type=jnp.float32) + b1
    h = jnp.maximum(h, 0.0)                                      # (Bt, E*h1)

    # --- Final Linear(h1, 1) per head: VPU multiply + per-head lane reduce ---
    z = h * w2
    qs = []
    for e in range(E):
        qe = jnp.sum(z[:, e * h1:(e + 1) * h1], axis=-1) + b2_ref[e]  # (Bt,)
        qs.append(qe)

    # Lane-dense (E, Bt) store: batch on the lane axis.
    out_ref[...] = jnp.stack(qs, axis=0).astype(out_ref.dtype)


def pack_critic_params(params, state_dim):
    """One-time packing of the per-head params into fused kernel operands."""
    w0, b0, g, beta, w1, b1, w2, b2 = params
    E, D, h0 = w0.shape
    h1 = w1.shape[-1]
    EH0, EH1 = E * h0, E * h1
    Hmax = max(EH0, EH1)

    # First linear fused over heads along N; split into state / ac parts (split-K).
    w0_fused = jnp.transpose(w0, (1, 0, 2)).reshape(D, EH0)      # (D, E*h0)
    w0s = w0_fused[:state_dim]
    w0a = w0_fused[state_dim:] if state_dim < D else None

    # Block-diagonal hidden-layer weight: (E*h0, E*h1).
    w1_blk = jax.scipy.linalg.block_diag(*[w1[e] for e in range(E)])

    # Pack the tiny per-head vector params into one (8, Hmax) operand.
    vec = jnp.zeros((8, Hmax), jnp.float32)
    vec = vec.at[0, :EH0].set(b0.reshape(EH0))
    vec = vec.at[1, :EH0].set(g.reshape(EH0))
    vec = vec.at[2, :EH0].set(beta.reshape(EH0))
    vec = vec.at[3, :EH1].set(b1.reshape(EH1))
    vec = vec.at[4, :EH1].set(w2.reshape(EH1))

    b2_flat = b2.reshape(E)                                       # SMEM scalars
    return (w0s, w0a, w1_blk, vec, b2_flat)


@jax.jit
def critic_forward_pallas(state, ac, packed):
    """Runs the Critic forward pass. Returns an (E, B) array of Q-values."""
    w0s, w0a, w1_blk, vec, b2 = packed
    B, S = state.shape
    E = b2.shape[0]
    EH0, EH1 = w1_blk.shape
    h0, h1 = EH0 // E, EH1 // E
    has_ac = ac is not None
    if has_ac:
        assert w0a is not None, "packed params were built without an action split"
    A = ac.shape[-1] if has_ac else 0

    kernel = functools.partial(_critic_kernel, E, h0, h1, has_ac)
    if has_ac:
        inputs = (state, ac, w0s, w0a, w1_blk, vec, b2)
    else:
        inputs = (state, w0s, w1_blk, vec, b2)

    # Advisory cost estimate so XLA can schedule/overlap this tiny custom call.
    flops = int(2 * B * ((S + A) * EH0 + EH0 * EH1 + EH1) + 12 * B * (EH0 + EH1))
    bytes_accessed = int(4 * (B * (S + A) + (S + A) * EH0 + EH0 * EH1
                              + vec.size + E + E * B))
    cost = pl.CostEstimate(flops=flops, transcendentals=int(B * EH0),
                           bytes_accessed=bytes_accessed)

    vmem = pltpu.MemorySpace.VMEM
    smem = pltpu.MemorySpace.SMEM

    use_grid = (B % _BATCH_BLOCK == 0) and (B // _BATCH_BLOCK >= 2)
    if use_grid:
        # Large batch: parallel 1-D grid over batch (shards across v7x's two
        # TensorCores, restores DMA/compute overlap, caps per-step VMEM).
        nb = B // _BATCH_BLOCK
        bmap = lambda i: (i, 0)        # batch-tiled operands
        pmap = lambda i: (0, 0)        # resident params
        in_specs = [pl.BlockSpec((_BATCH_BLOCK, S), bmap)]
        if has_ac:
            in_specs.append(pl.BlockSpec((_BATCH_BLOCK, A), bmap))
        in_specs.append(pl.BlockSpec(w0s.shape, pmap))
        if has_ac:
            in_specs.append(pl.BlockSpec(w0a.shape, pmap))
        in_specs += [
            pl.BlockSpec(w1_blk.shape, pmap),
            pl.BlockSpec(vec.shape, pmap),
            pl.BlockSpec(memory_space=smem),
        ]
        out = pl.pallas_call(
            kernel,
            out_shape=jax.ShapeDtypeStruct((E, B), jnp.float32),
            grid=(nb,),
            in_specs=in_specs,
            out_specs=pl.BlockSpec((E, _BATCH_BLOCK), lambda i: (0, i)),
            compiler_params=pltpu.CompilerParams(
                dimension_semantics=("parallel",)),
            cost_estimate=cost,
        )(*inputs)
    else:
        # Small batch: single invocation, everything resident (latency-bound).
        in_specs = ([pl.BlockSpec(memory_space=vmem) for _ in range(len(inputs) - 1)]
                    + [pl.BlockSpec(memory_space=smem)])
        out = pl.pallas_call(
            kernel,
            out_shape=jax.ShapeDtypeStruct((E, B), jnp.float32),
            in_specs=in_specs,
            out_specs=pl.BlockSpec(memory_space=vmem),
            cost_estimate=cost,
        )(*inputs)
    return out                                                    # (E, B)


def init_critic_params(key, input_dim, hidden_dims, ensemble):
    """Deterministic synthetic init of the stacked ensemble parameters."""
    h0, h1 = hidden_dims[0], hidden_dims[1]
    ks = jax.random.split(key, 5)

    def unif(k, shape, fan_in, scale=1.0):
        bound = scale / jnp.sqrt(jnp.float32(fan_in))
        return jax.random.uniform(k, shape, jnp.float32, -bound, bound)

    w0 = unif(ks[0], (ensemble, input_dim, h0), input_dim)
    b0 = unif(ks[1], (ensemble, 1, h0), input_dim)
    g = jnp.ones((ensemble, 1, h0), jnp.float32)          # LayerNorm weight
    beta = jnp.zeros((ensemble, 1, h0), jnp.float32)      # LayerNorm bias
    w1 = unif(ks[2], (ensemble, h0, h1), h0)
    b1 = unif(ks[3], (ensemble, 1, h1), h0)
    # small_weight=True on the MLP output layer -> tiny final-layer init.
    w2 = unif(ks[4], (ensemble, 1, h1), h1, scale=1e-2)
    b2 = jnp.zeros((ensemble, 1, 1), jnp.float32)
    return (w0, b0, g, beta, w1, b1, w2, b2)


def _reference_forward(state, ac, params):
    """Pure-JAX reference mirroring the PyTorch forward (sanity check)."""
    x = jnp.concatenate([state, ac], axis=-1) if ac is not None else state
    w0, b0, g, beta, w1, b1, w2, b2 = params
    E = w0.shape[0]
    qs = []
    for e in range(E):
        h = x @ w0[e] + b0[e]
        mu = h.mean(-1, keepdims=True)
        var = ((h - mu) ** 2).mean(-1, keepdims=True)
        h = (h - mu) / jnp.sqrt(var + LN_EPS) * g[e] + beta[e]
        h = jnp.tanh(h)
        h = jnp.maximum(h @ w1[e] + b1[e], 0.0)
        qs.append((h * w2[e]).sum(-1) + b2[e, 0, 0])
    return jnp.stack(qs, axis=0)


if __name__ == "__main__":
    # Small shapes consistent with the module.
    batch = 8
    state_dim, ac_dim = 12, 4
    input_dim = state_dim + ac_dim
    hidden_dims = [32, 32]     # h[0] -> LayerNorm/Tanh; MLP hidden = h[1:]
    ensemble = 2

    key = jax.random.PRNGKey(0)
    k_s, k_a, k_p, k_sb, k_ab = jax.random.split(key, 5)
    state = jax.random.normal(k_s, (batch, state_dim), jnp.float32)
    ac = jax.random.normal(k_a, (batch, ac_dim), jnp.float32)
    params = init_critic_params(k_p, input_dim, hidden_dims, ensemble)
    packed = pack_critic_params(params, state_dim)

    # --- small-batch (no-grid) path ---
    q_all = jax.block_until_ready(critic_forward_pallas(state, ac, packed))
    q_ref = _reference_forward(state, ac, params)
    assert q_all.shape == (ensemble, batch)
    assert jnp.allclose(q_all, q_ref, atol=2e-4, rtol=2e-4), "mismatch vs reference"

    # Mirror the PyTorch return convention: list of per-ensemble (B,) arrays.
    q = [q_all[e] for e in range(ensemble)] if ensemble > 1 else q_all[0]

    # --- ac=None, ensemble=1 path (q[0] convention) ---
    params1 = init_critic_params(jax.random.PRNGKey(1), state_dim, hidden_dims, 1)
    packed1 = pack_critic_params(params1, state_dim)
    q1 = jax.block_until_ready(critic_forward_pallas(state, None, packed1))
    q1_ref = _reference_forward(state, None, params1)
    assert jnp.allclose(q1, q1_ref, atol=2e-4, rtol=2e-4), "mismatch vs reference (no ac)"

    # --- large-batch path: parallel grid over batch, lane-dense (E, Bt) blocks ---
    big_b = 512
    state_b = jax.random.normal(k_sb, (big_b, state_dim), jnp.float32)
    ac_b = jax.random.normal(k_ab, (big_b, ac_dim), jnp.float32)
    qb = jax.block_until_ready(critic_forward_pallas(state_b, ac_b, packed))
    qb_ref = _reference_forward(state_b, ac_b, params)
    assert qb.shape == (ensemble, big_b)
    assert jnp.allclose(qb, qb_ref, atol=2e-4, rtol=2e-4), "mismatch vs reference (grid)"

    print("KERNEL_OK")
</pallas_src>

<mosaic_0001>
module attributes {stable_mosaic.version = 11 : i64} {
  func.func @_critic_kernel(%arg0: memref<8x12xf32, #tpu.memory_space<vmem>>, %arg1: memref<8x4xf32, #tpu.memory_space<vmem>>, %arg2: memref<12x64xf32, #tpu.memory_space<vmem>>, %arg3: memref<4x64xf32, #tpu.memory_space<vmem>>, %arg4: memref<64x64xf32, #tpu.memory_space<vmem>>, %arg5: memref<8x64xf32, #tpu.memory_space<vmem>>, %arg6: memref<2xf32, #tpu.memory_space<smem>>, %arg7: memref<2x8xf32, #tpu.memory_space<vmem>>) attributes {dimension_semantics = [], scalar_prefetch = 0 : i64, scratch_operands = 0 : i64, tpu.core_type = #tpu.core_type<tc>} {
    %c0 = arith.constant 0 : index
    %c0_0 = arith.constant 0 : index
    %0 = vector.load %arg5[%c0, %c0_0] : memref<8x64xf32, #tpu.memory_space<vmem>>, vector<1x64xf32>
    %c1 = arith.constant 1 : index
    %c0_1 = arith.constant 0 : index
    %1 = vector.load %arg5[%c1, %c0_1] : memref<8x64xf32, #tpu.memory_space<vmem>>, vector<1x64xf32>
    %c2 = arith.constant 2 : index
    %c0_2 = arith.constant 0 : index
    %2 = vector.load %arg5[%c2, %c0_2] : memref<8x64xf32, #tpu.memory_space<vmem>>, vector<1x64xf32>
    %c3 = arith.constant 3 : index
    %c0_3 = arith.constant 0 : index
    %3 = vector.load %arg5[%c3, %c0_3] : memref<8x64xf32, #tpu.memory_space<vmem>>, vector<1x64xf32>
    %c4 = arith.constant 4 : index
    %c0_4 = arith.constant 0 : index
    %4 = vector.load %arg5[%c4, %c0_4] : memref<8x64xf32, #tpu.memory_space<vmem>>, vector<1x64xf32>
    %c0_5 = arith.constant 0 : index
    %c0_6 = arith.constant 0 : index
    %5 = vector.load %arg0[%c0_5, %c0_6] : memref<8x12xf32, #tpu.memory_space<vmem>>, vector<8x12xf32>
    %c0_7 = arith.constant 0 : index
    %c0_8 = arith.constant 0 : index
    %6 = vector.load %arg2[%c0_7, %c0_8] : memref<12x64xf32, #tpu.memory_space<vmem>>, vector<12x64xf32>
    %cst = arith.constant dense<0.000000e+00> : vector<8x64xf32>
    %7 = tpu.matmul %5, %6, %cst {dimension_numbers = #tpu.dot_dimension_numbers<[1], [0], [0], [1], [0, 0, 1, 1], [], []>} : vector<8x12xf32>, vector<12x64xf32>, vector<8x64xf32> -> vector<8x64xf32>
    %c0_9 = arith.constant 0 : index
    %c0_10 = arith.constant 0 : index
    %8 = vector.load %arg1[%c0_9, %c0_10] : memref<8x4xf32, #tpu.memory_space<vmem>>, vector<8x4xf32>
    %c0_11 = arith.constant 0 : index
    %c0_12 = arith.constant 0 : index
    %9 = vector.load %arg3[%c0_11, %c0_12] : memref<4x64xf32, #tpu.memory_space<vmem>>, vector<4x64xf32>
    %cst_13 = arith.constant dense<0.000000e+00> : vector<8x64xf32>
    %10 = tpu.matmul %8, %9, %cst_13 {dimension_numbers = #tpu.dot_dimension_numbers<[1], [0], [0], [1], [0, 0, 1, 1], [], []>} : vector<8x4xf32>, vector<4x64xf32>, vector<8x64xf32> -> vector<8x64xf32>
    %11 = arith.addf %7, %10 : vector<8x64xf32>
    %12 = vector.broadcast %0 : vector<1x64xf32> to vector<8x64xf32>
    %13 = arith.addf %11, %12 : vector<8x64xf32>
    %14 = vector.extract_strided_slice %13 {offsets = [0, 0], sizes = [8, 32], strides = [1, 1]} : vector<8x64xf32> to vector<8x32xf32>
    %cst_14 = arith.constant dense<0.000000e+00> : vector<8xf32>
    %15 = vector.multi_reduction <add>, %14, %cst_14 [1] : vector<8x32xf32> to vector<8xf32>
    %16 = vector.shape_cast %15 : vector<8xf32> to vector<8x1xf32>
    %cst_15 = arith.constant 3.200000e+01 : f32
    %17 = vector.broadcast %cst_15 : f32 to vector<8x1xf32>
    %18 = arith.divf %16, %17 : vector<8x1xf32>
    %19 = vector.broadcast %18 : vector<8x1xf32> to vector<8x32xf32>
    %20 = arith.subf %14, %19 : vector<8x32xf32>
    %21 = arith.mulf %20, %20 : vector<8x32xf32>
    %cst_16 = arith.constant dense<0.000000e+00> : vector<8xf32>
    %22 = vector.multi_reduction <add>, %21, %cst_16 [1] : vector<8x32xf32> to vector<8xf32>
    %23 = vector.shape_cast %22 : vector<8xf32> to vector<8x1xf32>
    %cst_17 = arith.constant 3.200000e+01 : f32
    %24 = vector.broadcast %cst_17 : f32 to vector<8x1xf32>
    %25 = arith.divf %23, %24 : vector<8x1xf32>
    %cst_18 = arith.constant 9.99999974E-6 : f32
    %26 = vector.broadcast %cst_18 : f32 to vector<8x1xf32>
    %27 = arith.addf %25, %26 : vector<8x1xf32>
    %28 = math.rsqrt %27 : vector<8x1xf32>
    %29 = vector.broadcast %28 : vector<8x1xf32> to vector<8x32xf32>
    %30 = arith.mulf %20, %29 : vector<8x32xf32>
    %31 = vector.extract_strided_slice %13 {offsets = [0, 32], sizes = [8, 32], strides = [1, 1]} : vector<8x64xf32> to vector<8x32xf32>
    %cst_19 = arith.constant dense<0.000000e+00> : vector<8xf32>
    %32 = vector.multi_reduction <add>, %31, %cst_19 [1] : vector<8x32xf32> to vector<8xf32>
    %33 = vector.shape_cast %32 : vector<8xf32> to vector<8x1xf32>
    %cst_20 = arith.constant 3.200000e+01 : f32
    %34 = vector.broadcast %cst_20 : f32 to vector<8x1xf32>
    %35 = arith.divf %33, %34 : vector<8x1xf32>
    %36 = vector.broadcast %35 : vector<8x1xf32> to vector<8x32xf32>
    %37 = arith.subf %31, %36 : vector<8x32xf32>
    %38 = arith.mulf %37, %37 : vector<8x32xf32>
    %cst_21 = arith.constant dense<0.000000e+00> : vector<8xf32>
    %39 = vector.multi_reduction <add>, %38, %cst_21 [1] : vector<8x32xf32> to vector<8xf32>
    %40 = vector.shape_cast %39 : vector<8xf32> to vector<8x1xf32>
    %cst_22 = arith.constant 3.200000e+01 : f32
    %41 = vector.broadcast %cst_22 : f32 to vector<8x1xf32>
    %42 = arith.divf %40, %41 : vector<8x1xf32>
    %cst_23 = arith.constant 9.99999974E-6 : f32
    %43 = vector.broadcast %cst_23 : f32 to vector<8x1xf32>
    %44 = arith.addf %42, %43 : vector<8x1xf32>
    %45 = math.rsqrt %44 : vector<8x1xf32>
    %46 = vector.broadcast %45 : vector<8x1xf32> to vector<8x32xf32>
    %47 = arith.mulf %37, %46 : vector<8x32xf32>
    %48 = tpu.concatenate %30, %47 in 1 : vector<8x32xf32>, vector<8x32xf32> -> vector<8x64xf32>
    %49 = vector.broadcast %1 : vector<1x64xf32> to vector<8x64xf32>
    %50 = arith.mulf %48, %49 : vector<8x64xf32>
    %51 = vector.broadcast %2 : vector<1x64xf32> to vector<8x64xf32>
    %52 = arith.addf %50, %51 : vector<8x64xf32>
    %53 = math.tanh %52 : vector<8x64xf32>
    %c0_24 = arith.constant 0 : index
    %c0_25 = arith.constant 0 : index
    %54 = vector.load %arg4[%c0_24, %c0_25] : memref<64x64xf32, #tpu.memory_space<vmem>>, vector<64x64xf32>
    %cst_26 = arith.constant dense<0.000000e+00> : vector<8x64xf32>
    %55 = tpu.matmul %53, %54, %cst_26 {dimension_numbers = #tpu.dot_dimension_numbers<[1], [0], [0], [1], [0, 0, 1, 1], [], []>} : vector<8x64xf32>, vector<64x64xf32>, vector<8x64xf32> -> vector<8x64xf32>
    %56 = vector.broadcast %3 : vector<1x64xf32> to vector<8x64xf32>
    %57 = arith.addf %55, %56 : vector<8x64xf32>
    %cst_27 = arith.constant 0.000000e+00 : f32
    %58 = vector.broadcast %cst_27 : f32 to vector<8x64xf32>
    %59 = arith.maximumf %57, %58 : vector<8x64xf32>
    %60 = vector.broadcast %4 : vector<1x64xf32> to vector<8x64xf32>
    %61 = arith.mulf %59, %60 : vector<8x64xf32>
    %62 = vector.extract_strided_slice %61 {offsets = [0, 0], sizes = [8, 32], strides = [1, 1]} : vector<8x64xf32> to vector<8x32xf32>
    %cst_28 = arith.constant dense<0.000000e+00> : vector<8xf32>
    %63 = vector.multi_reduction <add>, %62, %cst_28 [1] : vector<8x32xf32> to vector<8xf32>
    %c0_29 = arith.constant 0 : index
    %64 = memref.load %arg6[%c0_29] : memref<2xf32, #tpu.memory_space<smem>>
    %65 = vector.broadcast %64 : f32 to vector<8xf32>
    %66 = arith.addf %63, %65 : vector<8xf32>
    %67 = vector.extract_strided_slice %61 {offsets = [0, 32], sizes = [8, 32], strides = [1, 1]} : vector<8x64xf32> to vector<8x32xf32>
    %cst_30 = arith.constant dense<0.000000e+00> : vector<8xf32>
    %68 = vector.multi_reduction <add>, %67, %cst_30 [1] : vector<8x32xf32> to vector<8xf32>
    %c1_31 = arith.constant 1 : index
    %69 = memref.load %arg6[%c1_31] : memref<2xf32, #tpu.memory_space<smem>>
    %70 = vector.broadcast %69 : f32 to vector<8xf32>
    %71 = arith.addf %68, %70 : vector<8xf32>
    %72 = vector.shape_cast %66 : vector<8xf32> to vector<1x8xf32>
    %73 = vector.shape_cast %71 : vector<8xf32> to vector<1x8xf32>
    %74 = tpu.concatenate %72, %73 in 0 : vector<1x8xf32>, vector<1x8xf32> -> vector<2x8xf32>
    %c0_32 = arith.constant 0 : index
    %c0_33 = arith.constant 0 : index
    %75 = vector.load %arg7[%c0_32, %c0_33] : memref<2x8xf32, #tpu.memory_space<vmem>>, vector<2x8xf32>
    tpu.vector_store %arg7[%c0_32, %c0_33], %74 {strides = array<i32>} : memref<2x8xf32, #tpu.memory_space<vmem>>, vector<2x8xf32>,
    return
  }
}

</mosaic_0001>

<llo_original>
// kernel: critic_forward_pallas.1
$region0: #{critic_forward_pallas.1}
  #allocation0 [shape = 'u32[]', space=smem, size = 0x4, offset = 0x4, fixed_abs, tag = 'smem constant byte address 0x4 - core index']
  #allocation1 [shape = 'u32[144,128]{1,0:T(1,128)}', space=vmem, size = 0x12000, scoped, tag = 'internal scratch']
  %s0 = inlined_call_operand.vmem [shape: f32[8,12], index: 0, kind: input, shape index: {}]
  %s1 = inlined_call_operand.vmem [shape: f32[8,4], index: 1, kind: input, shape index: {}]
  %s2 = inlined_call_operand.hbm [shape: f32[12,64], index: 2, kind: input, shape index: {}]
  %s3 = inlined_call_operand.hbm [shape: f32[4,64], index: 3, kind: input, shape index: {}]
  %s4 = inlined_call_operand.hbm [shape: f32[64,64], index: 4, kind: input, shape index: {}]
  %s5 = inlined_call_operand.vmem [shape: f32[8,64], index: 5, kind: input, shape index: {}]
  %s6 = inlined_call_operand.vmem [shape: f32[2], index: 6, kind: input, shape index: {}]
  %s7 = inlined_call_operand.hbm [shape: f32[2,8], index: 7, kind: output, shape index: {}]
  %s8 = sld [smem:[#allocation0]]
  $region54: #{critic_forward_pallas.1} parent=0
    _
  %s10 = ssub.s32 1, %s8
  %s11 = scalar_select 0, %s10, %s8
  $region1: #{critic_forward_pallas.1} parent=0
    #allocation2 [shape = 'u8[8192]{0}', space=vmem, size = 0x2000, scoped, tag = 'input window, operand 2, single buffered']
    #allocation3 [shape = 's32[1]{0}', space=sflag, size = 0x4, scoped, tag = 'scoped memory for critic_forward_pallas.1']
    #allocation4 [shape = 's32[1]{0}', space=sflag, size = 0x4, scoped, tag = 'scoped memory for critic_forward_pallas.1']
    #allocation5 [shape = 's32[1]{0}', space=sflag, size = 0x4, scoped, tag = 'scoped memory for critic_forward_pallas.1']
    #allocation6 [shape = 'u8[2048]{0}', space=vmem, size = 0x800, scoped, tag = 'input window, operand 3, single buffered']
    #allocation7 [shape = 's32[1]{0}', space=sflag, size = 0x4, scoped, tag = 'scoped memory for critic_forward_pallas.1']
    #allocation8 [shape = 'u8[32768]{0}', space=vmem, size = 0x8000, scoped, tag = 'input window, operand 4, single buffered']
    #allocation9 [shape = 'u8[512]{0}', space=smem, size = 0x200, scoped, tag = 'input window, operand 6, single buffered']
    #allocation10 [shape = 'u8[1024]{0}', space=vmem, size = 0x400, scoped, tag = 'output window, operand 0, single buffered']
    %12 = vsyncpa [#allocation3], 0
    %13 = vsyncpa [#allocation7], 0
    %14 = vsyncpa [#allocation5], 0
    %15 = vsyncpa [#allocation4], 0
    // Predicated region
    $region2: #{critic_forward_pallas.1} parent=1 // pred_check
      _
    $region3: #{critic_forward_pallas.1} parent=1 // pred_check_branch
      %17 = sbr.rel (0) target = $region5
    $region4: #{critic_forward_pallas.1} parent=1 // pred_region
      _
    $region5: #{critic_forward_pallas.1} parent=1 // pred_fallthru
      _
    // Predicated region
    $region6: #{critic_forward_pallas.1} parent=1 // pred_check
      _
    $region7: #{critic_forward_pallas.1} parent=1 // pred_check_branch
      %19 = sbr.rel (0) target = $region9
    $region8: #{critic_forward_pallas.1} parent=1 // pred_region
      _
    $region9: #{critic_forward_pallas.1} parent=1 // pred_fallthru
      _
    // Predicated region
    $region10: #{critic_forward_pallas.1} parent=1 // pred_check
      _
    $region11: #{critic_forward_pallas.1} parent=1 // pred_check_branch
      %21 = sbr.rel (0) target = $region13
    $region12: #{critic_forward_pallas.1} parent=1 // pred_region
      %s23 = ssub.s32 256, 256
      %24 = vsyncadd [#allocation3], %s23
      %s25 = sshll.u32 [#allocation2], 4
      %s26 = int_to_ptr.vmem [resolvable:$true] %s25
      %31 = dma.hbm_to_vmem [thread:$0]  %s2, 256, %s26, [#allocation3], 128, 128, 8
    $region13: #{critic_forward_pallas.1} parent=1 // pred_fallthru
      _
    // Predicated region
    $region14: #{critic_forward_pallas.1} parent=1 // pred_check
      _
    $region15: #{critic_forward_pallas.1} parent=1 // pred_check_branch
      %33 = sbr.rel (0) target = $region17
    $region16: #{critic_forward_pallas.1} parent=1 // pred_region
      %s35 = ssub.s32 64, 64
      %36 = vsyncadd [#allocation7], %s35
      %s38 = sshll.u32 [#allocation6], 4
      %s39 = int_to_ptr.vmem [resolvable:$true] %s38
      %41 = dma.hbm_to_vmem [thread:$0]  %s3, 64, %s39, [#allocation7]
    $region17: #{critic_forward_pallas.1} parent=1 // pred_fallthru
      _
    // Predicated region
    $region18: #{critic_forward_pallas.1} parent=1 // pred_check
      _
    $region19: #{critic_forward_pallas.1} parent=1 // pred_check_branch
      %43 = sbr.rel (0) target = $region21
    $region20: #{critic_forward_pallas.1} parent=1 // pred_region
      %s45 = ssub.s32 1024, 1024
      %46 = vsyncadd [#allocation7], %s45
      %s47 = sshll.u32 [#allocation8], 4
      %s48 = int_to_ptr.vmem [resolvable:$true] %s47
      %53 = dma.hbm_to_vmem [thread:$0]  %s4, 1024, %s48, [#allocation7], 128, 128, 8
    $region21: #{critic_forward_pallas.1} parent=1 // pred_fallthru
      _
    // Predicated region
    $region22: #{critic_forward_pallas.1} parent=1 // pred_check
      _
    $region23: #{critic_forward_pallas.1} parent=1 // pred_check_branch
      %55 = sbr.rel (0) target = $region25
    $region24: #{critic_forward_pallas.1} parent=1 // pred_region
      _
    $region25: #{critic_forward_pallas.1} parent=1 // pred_fallthru
      _
    // Predicated region
    $region26: #{critic_forward_pallas.1} parent=1 // pred_check
      _
    $region27: #{critic_forward_pallas.1} parent=1 // pred_check_branch
      %57 = sbr.rel (0) target = $region29
    $region28: #{critic_forward_pallas.1} parent=1 // pred_region
      %s59 = ssub.s32 16, 16
      %60 = vsyncadd [#allocation5], %s59
      %s62 = sshll.u32 %s6, 4
      %s63 = int_to_ptr.vmem [resolvable:$true] %s62
      %65 = dma.vmem_to_smem %s63, 16, [#allocation9], [#allocation5]
    $region29: #{critic_forward_pallas.1} parent=1 // pred_fallthru
      _
    // Predicated region
    $region30: #{critic_forward_pallas.1} parent=1 // pred_check
      _
    $region31: #{critic_forward_pallas.1} parent=1 // pred_check_branch
      %67 = sbr.rel (0) target = $region33
    $region32: #{critic_forward_pallas.1} parent=1 // pred_region
      %68 = dma.done [#allocation3], 256
    $region33: #{critic_forward_pallas.1} parent=1 // pred_fallthru
      _
    // Predicated region
    $region34: #{critic_forward_pallas.1} parent=1 // pred_check
      _
    $region35: #{critic_forward_pallas.1} parent=1 // pred_check_branch
      %70 = sbr.rel (0) target = $region37
    $region36: #{critic_forward_pallas.1} parent=1 // pred_region
      %71 = dma.done [#allocation7], 64
    $region37: #{critic_forward_pallas.1} parent=1 // pred_fallthru
      _
    // Predicated region
    $region38: #{critic_forward_pallas.1} parent=1 // pred_check
      _
    $region39: #{critic_forward_pallas.1} parent=1 // pred_check_branch
      %73 = sbr.rel (0) target = $region41
    $region40: #{critic_forward_pallas.1} parent=1 // pred_region
      %74 = dma.done [#allocation7], 1024
    $region41: #{critic_forward_pallas.1} parent=1 // pred_fallthru
      _
    // Predicated region
    $region42: #{critic_forward_pallas.1} parent=1 // pred_check
      _
    $region43: #{critic_forward_pallas.1} parent=1 // pred_check_branch
      %76 = sbr.rel (0) target = $region45
    $region44: #{critic_forward_pallas.1} parent=1 // pred_region
      %77 = dma.done [#allocation5], 16
    $region45: #{critic_forward_pallas.1} parent=1 // pred_fallthru
      _
    %78 = sfence
    %v79 = vld [vmem:[%s5] sm:$0x1]
    %v80 = vld [vmem:[%s5 + $0x1] sm:$0x1]
    %v81 = vld [vmem:[%s5 + $0x2] sm:$0x1]
    %v82 = vld [vmem:[%s5 + $0x3] sm:$0x1]
    %v83 = vld [vmem:[%s5 + $0x4] sm:$0x1]
    %v84 = vld [vmem:[%s0] sm:$0xff]
    %v85 = vld [vmem:[#allocation2] sm:$0xff]
    %v86 = vld [vmem:[#allocation2 + $0x8] sm:$0xf]
    %v87 = vld [vmem:[%s1] sm:$0xff]
    %v88 = vld [vmem:[#allocation6] sm:$0xf]
    %vm89 = vcmask 31744
    %v91 = vsel %vm89, %v87, 0
    %vm93 = vcmask 1043456
    %v95 = vsel %vm93, %v88, 0
    %97 = vmatprep.subr.mxu0 0.0
    %98 = vmatpush1.msra.mxu0 0.0
    %99 = vmatprep.subr.mxu0 0.0
    %100 = vmatpush1.msra.mxu0 0.0
    %101 = vmatprep.subr.mxu0 0.0
    %102 = vmatpush1.msra.mxu0 0.0
    %103 = vmatprep.subr.mxu0 0.0
    %104 = vmatpush1.msra.mxu0 0.0
    %105 = vmatprep.subr.mxu0 0.0
    %106 = vmatpush1.msra.mxu0 0.0
    %107 = vmatprep.subr.mxu0 0.0
    %108 = vmatpush1.msra.mxu0 0.0
    %109 = vmatprep.subr.mxu0 0.0
    %110 = vmatpush1.msra.mxu0 0.0
    %111 = vmatprep.subr.mxu0 0.0
    %112 = vmatpush1.msra.mxu0 0.0
    %113 = vmatprep.subr.mxu0 0.0
    %114 = vmatpush1.msra.mxu0 0.0
    %115 = vmatprep.subr.mxu0 0.0
    %116 = vmatpush1.msra.mxu0 0.0
    %117 = vmatprep.subr.mxu0 0.0
    %118 = vmatpush1.msra.mxu0 0.0
    %119 = vmatprep.subr.mxu0 0.0
    %120 = vmatpush1.msra.mxu0 0.0
    %121 = vmatprep.subr.mxu0 0.0
    %122 = vmatpush1.msra.mxu0 0.0
    %123 = vmatprep.subr.mxu0 0.0
    %124 = vmatpush1.msra.mxu0 0.0
    %125 = vmatprep.subr.mxu0 0.0
    %126 = vmatpush1.msra.mxu0 0.0
    %127 = vmatprep.subr.mxu0 0.0
    %128 = vmatpush1.msra.mxu0 %v95
    %129 = vmatprep.subr.mxu0 0.0
    %130 = vmatpush2.msra.mxu0 0.0
    %131 = vmatprep.subr.mxu0 0.0
    %132 = vmatpush2.msra.mxu0 0.0
    %133 = vmatprep.subr.mxu0 0.0
    %134 = vmatpush2.msra.mxu0 0.0
    %135 = vmatprep.subr.mxu0 0.0
    %136 = vmatpush2.msra.mxu0 0.0
    %137 = vmatprep.subr.mxu0 0.0
    %138 = vmatpush2.msra.mxu0 0.0
    %139 = vmatprep.subr.mxu0 0.0
    %140 = vmatpush2.msra.mxu0 0.0
    %141 = vmatprep.subr.mxu0 0.0
    %142 = vmatpush2.msra.mxu0 0.0
    %143 = vmatprep.subr.mxu0 0.0
    %144 = vmatpush2.msra.mxu0 0.0
    %145 = vmatprep.subr.mxu0 0.0
    %146 = vmatpush2.msra.mxu0 0.0
    %147 = vmatprep.subr.mxu0 0.0
    %148 = vmatpush2.msra.mxu0 0.0
    %149 = vmatprep.subr.mxu0 0.0
    %150 = vmatpush2.msra.mxu0 0.0
    %151 = vmatprep.subr.mxu0 0.0
    %152 = vmatpush2.msra.mxu0 0.0
    %153 = vmatprep.subr.mxu0 0.0
    %154 = vmatpush2.msra.mxu0 0.0
    %155 = vmatprep.subr.mxu0 0.0
    %156 = vmatpush2.msra.mxu0 0.0
    %157 = vmatprep.subr.mxu0 0.0
    %158 = vmatpush2.msra.mxu0 0.0
    %159 = vmatprep.subr.mxu0 0.0
    %160 = vmatpush2.msra.mxu0 0.0
    %161 = vmatprep.mubr.f32.mxu0 0.0
    %162 = vmatmul.mubr.f32.gmra.mxu0 %v91
    %v163 = vpop.f32.mrf.mxu0
    %v164 = vadd.f32 0.0, %v163
    %v165 = vpop.f32.mrf.mxu0
    %166 = vdwg.mxu0
    %vm167 = vcmask 97280
    %v169 = vsel %vm167, %v84, 0
    %v172 = vsel %vm93, %v86, 0
    %174 = vmatprep.subr.mxu0 0.0
    %175 = vmatpush1.msra.mxu0 0.0
    %176 = vmatprep.subr.mxu0 0.0
    %177 = vmatpush1.msra.mxu0 0.0
    %178 = vmatprep.subr.mxu0 0.0
    %179 = vmatpush1.msra.mxu0 0.0
    %180 = vmatprep.subr.mxu0 0.0
    %181 = vmatpush1.msra.mxu0 0.0
    %182 = vmatprep.subr.mxu0 0.0
    %183 = vmatpush1.msra.mxu0 0.0
    %184 = vmatprep.subr.mxu0 0.0
    %185 = vmatpush1.msra.mxu0 0.0
    %186 = vmatprep.subr.mxu0 0.0
    %187 = vmatpush1.msra.mxu0 0.0
    %188 = vmatprep.subr.mxu0 0.0
    %189 = vmatpush1.msra.mxu0 0.0
    %190 = vmatprep.subr.mxu0 0.0
    %191 = vmatpush1.msra.mxu0 0.0
    %192 = vmatprep.subr.mxu0 0.0
    %193 = vmatpush1.msra.mxu0 0.0
    %194 = vmatprep.subr.mxu0 0.0
    %195 = vmatpush1.msra.mxu0 0.0
    %196 = vmatprep.subr.mxu0 0.0
    %197 = vmatpush1.msra.mxu0 0.0
    %198 = vmatprep.subr.mxu0 0.0
    %199 = vmatpush1.msra.mxu0 0.0
    %200 = vmatprep.subr.mxu0 0.0
    %201 = vmatpush1.msra.mxu0 0.0
    %202 = vmatprep.subr.mxu0 0.0
    %203 = vmatpush1.msra.mxu0 %v172
    %204 = vmatprep.subr.mxu0 0.0
    %205 = vmatpush1.msra.mxu0 %v85
    %206 = vmatprep.subr.mxu0 0.0
    %207 = vmatpush2.msra.mxu0 0.0
    %208 = vmatprep.subr.mxu0 0.0
    %209 = vmatpush2.msra.mxu0 0.0
    %210 = vmatprep.subr.mxu0 0.0
    %211 = vmatpush2.msra.mxu0 0.0
    %212 = vmatprep.subr.mxu0 0.0
    %213 = vmatpush2.msra.mxu0 0.0
    %214 = vmatprep.subr.mxu0 0.0
    %215 = vmatpush2.msra.mxu0 0.0
    %216 = vmatprep.subr.mxu0 0.0
    %217 = vmatpush2.msra.mxu0 0.0
    %218 = vmatprep.subr.mxu0 0.0
    %219 = vmatpush2.msra.mxu0 0.0
    %220 = vmatprep.subr.mxu0 0.0
    %221 = vmatpush2.msra.mxu0 0.0
    %222 = vmatprep.subr.mxu0 0.0
    %223 = vmatpush2.msra.mxu0 0.0
    %224 = vmatprep.subr.mxu0 0.0
    %225 = vmatpush2.msra.mxu0 0.0
    %226 = vmatprep.subr.mxu0 0.0
    %227 = vmatpush2.msra.mxu0 0.0
    %228 = vmatprep.subr.mxu0 0.0
    %229 = vmatpush2.msra.mxu0 0.0
    %230 = vmatprep.subr.mxu0 0.0
    %231 = vmatpush2.msra.mxu0 0.0
    %232 = vmatprep.subr.mxu0 0.0
    %233 = vmatpush2.msra.mxu0 0.0
    %234 = vmatprep.subr.mxu0 0.0
    %235 = vmatpush2.msra.mxu0 0.0
    %236 = vmatprep.subr.mxu0 0.0
    %237 = vmatpush2.msra.mxu0 0.0
    %238 = vmatprep.mubr.f32.mxu0 0.0
    %239 = vmatmul.mubr.f32.gmra.mxu0 %v169
    %v240 = vpop.f32.mrf.mxu0
    %v241 = vadd.f32 %v164, %v240
    %v242 = vpop.f32.mrf.mxu0
    %243 = vdwg.mxu0
    %v244 = vlaneseq
    %v245 = vshrl.u32 %v244, 7
    %v246 = vsub.s32 0, %v245
    %v247 = vrot.slane %v79, %v246
    %v248 = vadd.f32 %v241, %v247
    %vm249 = vcmask 261120
    %v250 = vsel %vm249, %v248, 0.0
    %251 = vadd.xlane.f32.xlu0 %v250
    %v252 = vpop.xlane.xlu0 %251
    %v253 = vrcp.pop 32.0
    %v254 = vmul.f32 %v252, %v253
    %v255 = vsub.f32 %v248, %v254
    %v256 = vmul.f32 %v255, %v255
    %v257 = vsel %vm249, %v256, 0.0
    %258 = vadd.xlane.f32.xlu0 %v257
    %v259 = vpop.xlane.xlu0 %258
    %v260 = vmul.f32 %v259, %v253
    %v261 = vadd.f32 %v260, 1e-05
    %v262 = vrsqrt.pop %v261
    %v263 = vmul.f32 %v255, %v262
    %265 = vrot.lane.b32.xlu0 %v248, 96
    %v266 = vpop.permute.xlu0 %265
    %v268 = vsel %vm249, %v266, 0.0
    %269 = vadd.xlane.f32.xlu0 %v268
    %v270 = vpop.xlane.xlu0 %269
    %v271 = vmul.f32 %v270, %v253
    %v272 = vsub.f32 %v248, %v271
    %v273 = vmul.f32 %v272, %v272
    %275 = vrot.lane.b32.xlu0 %v273, 96
    %v276 = vpop.permute.xlu0 %275
    %v278 = vsel %vm249, %v276, 0.0
    %279 = vadd.xlane.f32.xlu0 %v278
    %v280 = vpop.xlane.xlu0 %279
    %v281 = vmul.f32 %v280, %v253
    %v282 = vadd.f32 %v281, 1e-05
    %v283 = vrsqrt.pop %v282
    %v284 = vmul.f32 %v272, %v283
    %v285 = vsel %vm249, %v263, %v284
    %v286 = vlaneseq
    %v287 = vshrl.u32 %v286, 7
    %v288 = vsub.s32 0, %v287
    %v289 = vrot.slane %v80, %v288
    %v290 = vmul.f32 %v285, %v289
    %v291 = vlaneseq
    %v292 = vshrl.u32 %v291, 7
    %v293 = vsub.s32 0, %v292
    %v294 = vrot.slane %v81, %v293
    %v295 = vadd.f32 %v290, %v294
    %v296 = vtanh.pop %v295
    %v297 = vld [vmem:[#allocation8] sm:$0xff]
    %v298 = vld [vmem:[#allocation8 + $0x8] sm:$0xff]
    %v299 = vld [vmem:[#allocation8 + $0x10] sm:$0xff]
    %v300 = vld [vmem:[#allocation8 + $0x18] sm:$0xff]
    %v301 = vld [vmem:[#allocation8 + $0x20] sm:$0xff]
    %v302 = vld [vmem:[#allocation8 + $0x28] sm:$0xff]
    %v303 = vld [vmem:[#allocation8 + $0x30] sm:$0xff]
    %v304 = vld [vmem:[#allocation8 + $0x38] sm:$0xff]
    %v305 = vlaneseq
    %v306 = vshrl.u32 %v305, 7
    %v307 = vsub.s32 0, %v306
    %v308 = vrot.slane %v82, %v307
    %vm309 = vcmask 523264
    %v311 = vsel %vm309, %v296, 0
    %313 = vmatprep.subr.mxu0 0.0
    %314 = vmatpush1.msra.mxu0 0.0
    %315 = vmatprep.subr.mxu0 0.0
    %316 = vmatpush1.msra.mxu0 0.0
    %317 = vmatprep.subr.mxu0 0.0
    %318 = vmatpush1.msra.mxu0 0.0
    %319 = vmatprep.subr.mxu0 0.0
    %320 = vmatpush1.msra.mxu0 0.0
    %321 = vmatprep.subr.mxu0 0.0
    %322 = vmatpush1.msra.mxu0 0.0
    %323 = vmatprep.subr.mxu0 0.0
    %324 = vmatpush1.msra.mxu0 0.0
    %325 = vmatprep.subr.mxu0 0.0
    %326 = vmatpush1.msra.mxu0 0.0
    %327 = vmatprep.subr.mxu0 0.0
    %328 = vmatpush1.msra.mxu0 0.0
    %329 = vmatprep.subr.mxu0 0.0
    %330 = vmatpush1.msra.mxu0 %v304
    %331 = vmatprep.subr.mxu0 0.0
    %332 = vmatpush1.msra.mxu0 %v303
    %333 = vmatprep.subr.mxu0 0.0
    %334 = vmatpush1.msra.mxu0 %v302
    %335 = vmatprep.subr.mxu0 0.0
    %336 = vmatpush1.msra.mxu0 %v301
    %337 = vmatprep.subr.mxu0 0.0
    %338 = vmatpush1.msra.mxu0 %v300
    %339 = vmatprep.subr.mxu0 0.0
    %340 = vmatpush1.msra.mxu0 %v299
    %341 = vmatprep.subr.mxu0 0.0
    %342 = vmatpush1.msra.mxu0 %v298
    %343 = vmatprep.subr.mxu0 0.0
    %344 = vmatpush1.msra.mxu0 %v297
    %345 = vmatprep.subr.mxu0 0.0
    %346 = vmatpush2.msra.mxu0 0.0
    %347 = vmatprep.subr.mxu0 0.0
    %348 = vmatpush2.msra.mxu0 0.0
    %349 = vmatprep.subr.mxu0 0.0
    %350 = vmatpush2.msra.mxu0 0.0
    %351 = vmatprep.subr.mxu0 0.0
    %352 = vmatpush2.msra.mxu0 0.0
    %353 = vmatprep.subr.mxu0 0.0
    %354 = vmatpush2.msra.mxu0 0.0
    %355 = vmatprep.subr.mxu0 0.0
    %356 = vmatpush2.msra.mxu0 0.0
    %357 = vmatprep.subr.mxu0 0.0
    %358 = vmatpush2.msra.mxu0 0.0
    %359 = vmatprep.subr.mxu0 0.0
    %360 = vmatpush2.msra.mxu0 0.0
    %361 = vmatprep.subr.mxu0 0.0
    %362 = vmatpush2.msra.mxu0 0.0
    %363 = vmatprep.subr.mxu0 0.0
    %364 = vmatpush2.msra.mxu0 0.0
    %365 = vmatprep.subr.mxu0 0.0
    %366 = vmatpush2.msra.mxu0 0.0
    %367 = vmatprep.subr.mxu0 0.0
    %368 = vmatpush2.msra.mxu0 0.0
    %369 = vmatprep.subr.mxu0 0.0
    %370 = vmatpush2.msra.mxu0 0.0
    %371 = vmatprep.subr.mxu0 0.0
    %372 = vmatpush2.msra.mxu0 0.0
    %373 = vmatprep.subr.mxu0 0.0
    %374 = vmatpush2.msra.mxu0 0.0
    %375 = vmatprep.subr.mxu0 0.0
    %376 = vmatpush2.msra.mxu0 0.0
    %377 = vmatprep.mubr.f32.mxu0 0.0
    %378 = vmatmul.mubr.f32.gmra.mxu0 %v311
    %v379 = vpop.f32.mrf.mxu0
    %v380 = vadd.f32 %v308, %v379
    %v381 = vpop.f32.mrf.mxu0
    %382 = vdwg.mxu0
    %v383 = vmax.f32 %v380, 0.0
    %v384 = vlaneseq
    %v385 = vshrl.u32 %v384, 7
    %v386 = vsub.s32 0, %v385
    %v387 = vrot.slane %v83, %v386
    %v388 = vmul.f32 %v383, %v387
    %v389 = vsel %vm249, %v388, 0.0
    %390 = vadd.xlane.f32.xlu0 %v389
    %v391 = vpop.xlane.xlu0 %390
    %s392 = sld [smem:[#allocation9]]
    %v393 = vstv %s392
    %v394 = vadd.f32 %v391, %v393
    %396 = vrot.lane.b32.xlu0 %v388, 96
    %v397 = vpop.permute.xlu0 %396
    %v399 = vsel %vm249, %v397, 0.0
    %400 = vadd.xlane.f32.xlu0 %v399
    %v401 = vpop.xlane.xlu0 %400
    %s402 = sld [smem:[#allocation9 + $0x1]]
    %v403 = vstv %s402
    %v404 = vadd.f32 %v401, %v403
    %v406 = vlaneseq
    %v407 = vand.u32 %v406, 127
    %v408 = vlaneseq
    %v409 = vshrl.u32 %v408, 7
    %v410 = vsub.s32 %v407, %v409
    %v411 = vrot.slane %v394, %v410
    %v414 = vlaneseq
    %v415 = vshrl.u32 %v414, 7
    %v416 = vsub.s32 %v407, %v415
    %v417 = vrot.slane %v404, %v416
    %vm419 = vcmask 1040384
    %v420 = vsel %vm419, %v411, %v417
    %vm421 = vcmask 58368
    %422 = vst.msk [vmem:[#allocation10] sm:$0x3] %vm421, %v420
    // Predicated region
    $region46: #{critic_forward_pallas.1} parent=1 // pred_check
      _
    $region47: #{critic_forward_pallas.1} parent=1 // pred_check_branch
      %424 = sbr.rel (0) target = $region49
    $region48: #{critic_forward_pallas.1} parent=1 // pred_region
      %s426 = ssub.s32 32, 32
      %427 = vsyncadd [#allocation4], %s426
      %s429 = sshll.u32 [#allocation10], 4
      %s430 = int_to_ptr.vmem [resolvable:$true] %s429
      %432 = dma.vmem_to_hbm [thread:$0]  %s430, 32, %s7, [#allocation4]
    $region49: #{critic_forward_pallas.1} parent=1 // pred_fallthru
      _
    // Predicated region
    $region50: #{critic_forward_pallas.1} parent=1 // pred_check
      _
    $region51: #{critic_forward_pallas.1} parent=1 // pred_check_branch
      %434 = sbr.rel (0) target = $region53
    $region52: #{critic_forward_pallas.1} parent=1 // pred_region
      %435 = dma.done [#allocation4], 32
    $region53: #{critic_forward_pallas.1} parent=1 // pred_fallthru
      _
    %436 = vsyncpa [#allocation3], 1
    %437 = vsyncpa [#allocation7], 1
    %438 = vsyncpa [#allocation4], 1
    %439 = vsyncpa [#allocation5], 1

</llo_original>
